<compile_context>
chip_gen: v7x
topology: tpu7x:2x2x1
jax: 0.10.0
libtpu: 0.0.40
codegen_flags: <defaults>
</compile_context>

<pallas_src>
import functools
import math

import jax
import jax.numpy as jnp
from jax import lax
from jax.experimental import pallas as pl
from jax.experimental.pallas import tpu as pltpu


_MAX_TILE_ROWS = 16384   # packed-row tile cap (already >16 MiB/step for small Dp)


def _cdiv(a, b):
    return -(-a // b)


def _round_up(x, m):
    return _cdiv(x, m) * m


def _tpu_params():
    """Best-effort generation-aware sizing; falls back to safe defaults."""
    kind = ""
    try:
        kind = jax.devices()[0].device_kind.lower()
    except Exception:
        pass

    vmem_bytes = 0
    try:
        info = pltpu.get_tpu_info()
        vmem_bytes = int(getattr(info, "vmem_capacity_bytes", 0) or 0)
    except Exception:
        vmem_bytes = 0
    if vmem_bytes <= 0:
        vmem_bytes = 64 << 20  # conservative (v7x per-TensorCore VMEM)

    if vmem_bytes >= (96 << 20):
        # v5e / v6e: 128 MiB physical VMEM -> big tiles, high scoped limit.
        per_step_budget = 32 << 20
        vmem_limit_cap = 100 << 20
    else:
        # v7x: 64 MiB VMEM per TensorCore -> keep double-buffered footprint small.
        per_step_budget = 18 << 20
        vmem_limit_cap = 56 << 20

    # Single-TensorCore chips gain nothing from the chunk split.
    one_tc = any(t in kind for t in ("v5e", "v5 lite", "v6e", "v6 lite"))
    num_chunks = 1 if one_tc else 2
    return per_step_budget, vmem_limit_cap, num_chunks


def _l1_loss_kernel(*refs, packed_k, n_valid_rows, n_steps):
    if packed_k == 1:
        x_ref, g_ref, m_ref, out_ref = refs
        gmat_ref = None
    else:
        x_ref, g_ref, m_ref, gmat_ref, out_ref = refs

    c = pl.program_id(0)
    i = pl.program_id(1)
    tm = x_ref.shape[0]
    block_start = (c * n_steps + i) * tm

    # Zero the resident accumulator block at the start of each chunk's sweep.
    @pl.when(i == 0)
    def _init():
        out_ref[...] = jnp.zeros_like(out_ref)

    # Skip blocks that lie entirely past the valid packed rows (ragged tail).
    @pl.when(block_start < n_valid_rows)
    def _compute():
        diff = jnp.abs(x_ref[...].astype(jnp.float32) -
                       g_ref[...].astype(jnp.float32))
        if packed_k == 1:
            # D >= 128: plain per-row sum on the XLU; no gmat / MXU pass.
            row_sums = jnp.sum(diff, axis=-1, keepdims=True)          # (tm, 1)
        else:
            # D < 128: per-original-row reduction on the MXU via the constant
            # 0/1 group matrix, at HIGHEST precision (no bf16 rounding of f32).
            row_sums = jnp.dot(diff, gmat_ref[...],
                               preferred_element_type=jnp.float32,
                               precision=lax.Precision.HIGHEST)       # (tm, k)

        masked = row_sums * m_ref[...]
        # Row-validity mask: zero out garbage rows from partial / clamped
        # boundary blocks (also kills any NaN/Inf garbage before it spreads).
        row_idx = block_start + lax.broadcasted_iota(jnp.int32, masked.shape, 0)
        masked = jnp.where(row_idx < n_valid_rows, masked, 0.0)

        # Broadcast-accumulate over the whole (8, 128) block: one unmasked vreg
        # add/store per step. Wrapper reads element [0, 0].
        partial = jnp.sum(masked, keepdims=True)                      # (1, 1)
        out_ref[...] = out_ref[...] + partial


def l1_loss(input_tensor, ground_truth, mask):
    assert ground_truth.shape == input_tensor.shape
    *lead, D = input_tensor.shape
    M = 1
    for s in lead:
        M *= s
    assert mask.shape == tuple(lead)

    per_step_budget, vmem_limit_cap, num_chunks = _tpu_params()

    x = input_tensor.reshape(M, D)
    g = ground_truth.reshape(M, D)
    m = mask.reshape(M).astype(jnp.float32)

    # Lane-dense packing: k original rows per packed row so k*D % 128 == 0.
    k = (math.lcm(D, 128) // D) if D < 128 else 1
    Dp = k * D

    # Pad x/g ONLY when strictly required:
    #   (a) to a multiple of k so the (M, D) -> (M/k, k*D) reshape (a free
    #       row-major view) is valid, and
    #   (b) tiny inputs up to one minimum 16-row tile so a block is never
    #       taller than the array.
    # Everything else (grid-step alignment) is handled in-kernel -- no full
    # HBM copy of the big inputs on ragged M.
    min_packed = 16
    rows_needed = max(_round_up(M, k), min_packed * k)
    row_pad = rows_needed - M
    if row_pad:
        x = jnp.pad(x, ((0, row_pad), (0, 0)))
        g = jnp.pad(g, ((0, row_pad), (0, 0)))
    n_packed = rows_needed // k
    x = x.reshape(n_packed, Dp)
    g = g.reshape(n_packed, Dp)

    x_isz = jnp.dtype(x.dtype).itemsize
    g_isz = jnp.dtype(g.dtype).itemsize
    bytes_per_packed_row = Dp * (x_isz + g_isz) + k * 4

    # Tile rows: stream a large chunk of x+g per grid step (HBM-bound kernel),
    # bounded by the generation-aware VMEM budget and by the array itself.
    tm = per_step_budget // bytes_per_packed_row
    tm = min(tm, _MAX_TILE_ROWS, _round_up(_cdiv(n_packed, num_chunks), 16))
    tm = max(tm, 16)
    tm = (tm // 16) * 16
    tm = min(tm, (n_packed // 16) * 16)      # block never taller than the array

    n_steps = _cdiv(_cdiv(n_packed, num_chunks), tm)
    total_blocks = _cdiv(n_packed, tm)
    last_block = total_blocks - 1
    n_packed_cover = num_chunks * n_steps * tm

    # The mask is tiny (4 B / original row): pad it with zeros to full grid
    # coverage so its blocks never read out of bounds.
    m = jnp.pad(m, ((0, n_packed_cover * k - M),)).reshape(n_packed_cover, k)

    def xg_map(c, i):
        # Clamp so no block starts past the end of x / g; duplicated reads from
        # clamped blocks are zeroed by the in-kernel row-validity mask.
        return (jnp.minimum(c * n_steps + i, last_block), 0)

    def m_map(c, i):
        return (c * n_steps + i, 0)

    in_specs = [
        pl.BlockSpec((tm, Dp), xg_map),
        pl.BlockSpec((tm, Dp), xg_map),
        pl.BlockSpec((tm, k), m_map),
    ]
    inputs = [x, g, m]
    if k > 1:
        # Constant group matrix: gmat[l, j] = 1 iff lane l belongs to original row j.
        gmat = (jnp.arange(Dp)[:, None] // D ==
                jnp.arange(k)[None, :]).astype(jnp.float32)
        in_specs.append(pl.BlockSpec((Dp, k), lambda c, i: (0, 0)))
        inputs.append(gmat)

    # VMEM sizing: double-buffered x/g/mask tiles + gmat + output blocks + headroom.
    vmem_est = (2 * tm * bytes_per_packed_row
                + (2 * Dp * k * 4 if k > 1 else 0)
                + 4 * 8 * 128 * 4)
    vmem_limit = int(min(max(vmem_est + (4 << 20), 32 << 20), vmem_limit_cap))

    kernel = functools.partial(_l1_loss_kernel, packed_k=k,
                               n_valid_rows=n_packed, n_steps=n_steps)

    out = pl.pallas_call(
        kernel,
        out_shape=jax.ShapeDtypeStruct((num_chunks * 8, 128), jnp.float32),
        grid_spec=pltpu.PrefetchScalarGridSpec(
            num_scalar_prefetch=0,
            grid=(num_chunks, n_steps),
            in_specs=in_specs,
            out_specs=pl.BlockSpec((8, 128), lambda c, i: (c, 0)),
        ),
        compiler_params=pltpu.CompilerParams(
            dimension_semantics=("parallel", "arbitrary"),
            vmem_limit_bytes=vmem_limit,
        ),
        cost_estimate=pl.CostEstimate(
            flops=4 * M * D,
            transcendentals=0,
            bytes_accessed=M * D * (x_isz + g_isz) + M * 4
            + num_chunks * 8 * 128 * 4,
        ),
    )(*inputs)

    # Each chunk's block is uniformly filled with its partial sum; fold the
    # inner mean (1/D) and outer mean (1/M) into a single divide here.
    partials = out.reshape(num_chunks, 8, 128)[:, 0, 0]
    return jnp.sum(partials) / (D * M)


def l1_loss_ref(input_tensor, ground_truth, mask):
    return jnp.mean(jnp.mean(jnp.abs(input_tensor - ground_truth), axis=-1) * mask)


if __name__ == "__main__":
    key = jax.random.PRNGKey(0)
    k1, k2, k3 = jax.random.split(key, 3)

    B, N, D = 2, 16, 32
    x = jax.random.normal(k1, (B, N, D), dtype=jnp.float32)
    gt = jax.random.normal(k2, (B, N, D), dtype=jnp.float32)
    mask = (jax.random.uniform(k3, (B, N)) > 0.5).astype(jnp.float32)

    loss = jax.block_until_ready(l1_loss(x, gt, mask))
    ref = l1_loss_ref(x, gt, mask)

    assert jnp.allclose(loss, ref, rtol=1e-5, atol=1e-6), (loss, ref)
    print("KERNEL_OK")
</pallas_src>

<mosaic_0001>
module attributes {stable_mosaic.version = 11 : i64} {
  func.func @_l1_loss_kernel(%arg0: i32, %arg1: i32, %arg2: memref<16x128xf32, #tpu.memory_space<vmem>>, %arg3: memref<16x128xf32, #tpu.memory_space<vmem>>, %arg4: memref<16x4xf32, #tpu.memory_space<vmem>>, %arg5: memref<128x4xf32, #tpu.memory_space<vmem>>, %arg6: memref<8x128xf32, #tpu.memory_space<vmem>>) attributes {dimension_semantics = [#tpu.dimension_semantics<parallel>, #tpu.dimension_semantics<arbitrary>], iteration_bounds = array<i64: 2, 1>, scalar_prefetch = 0 : i64, scratch_operands = 0 : i64, tpu.core_type = #tpu.core_type<tc>, window_params = [{transform_indices = @transform_0, window_bounds = array<i64: 16, 128>}, {transform_indices = @transform_1, window_bounds = array<i64: 16, 128>}, {transform_indices = @transform_2, window_bounds = array<i64: 16, 4>}, {pipeline_mode = #tpu.pipeline_mode<synchronous>, transform_indices = @transform_3, window_bounds = array<i64: 128, 4>}, {transform_indices = @transform_4, window_bounds = array<i64: 8, 128>}]} {
    %c1_i32 = arith.constant 1 : i32
    %0 = arith.muli %arg0, %c1_i32 : i32
    %1 = arith.addi %0, %arg1 : i32
    %c16_i32 = arith.constant 16 : i32
    %2 = arith.muli %1, %c16_i32 : i32
    %c0_i32 = arith.constant 0 : i32
    %3 = arith.cmpi eq, %arg1, %c0_i32 : i32
    %4 = arith.extui %3 : i1 to i32
    %c0_i32_0 = arith.constant 0 : i32
    %5 = arith.cmpi ne, %4, %c0_i32_0 : i32
    scf.if %5 {
      %cst = arith.constant 0.000000e+00 : f32
      %9 = vector.broadcast %cst : f32 to vector<8x128xf32>
      %c0 = arith.constant 0 : index
      %c0_3 = arith.constant 0 : index
      %10 = vector.load %arg6[%c0, %c0_3] : memref<8x128xf32, #tpu.memory_space<vmem>>, vector<8x128xf32>
      tpu.vector_store %arg6[%c0, %c0_3], %9 {strides = array<i32>} : memref<8x128xf32, #tpu.memory_space<vmem>>, vector<8x128xf32>,
    } else {
    }
    %c16_i32_1 = arith.constant 16 : i32
    %6 = arith.cmpi slt, %2, %c16_i32_1 : i32
    %7 = arith.extui %6 : i1 to i32
    %c0_i32_2 = arith.constant 0 : i32
    %8 = arith.cmpi ne, %7, %c0_i32_2 : i32
    scf.if %8 {
      %c0 = arith.constant 0 : index
      %c0_3 = arith.constant 0 : index
      %9 = vector.load %arg2[%c0, %c0_3] : memref<16x128xf32, #tpu.memory_space<vmem>>, vector<16x128xf32>
      %c0_4 = arith.constant 0 : index
      %c0_5 = arith.constant 0 : index
      %10 = vector.load %arg3[%c0_4, %c0_5] : memref<16x128xf32, #tpu.memory_space<vmem>>, vector<16x128xf32>
      %11 = arith.subf %9, %10 : vector<16x128xf32>
      %12 = math.absf %11 : vector<16x128xf32>
      %c0_6 = arith.constant 0 : index
      %c0_7 = arith.constant 0 : index
      %13 = vector.load %arg5[%c0_6, %c0_7] : memref<128x4xf32, #tpu.memory_space<vmem>>, vector<128x4xf32>
      %cst = arith.constant dense<0.000000e+00> : vector<16x4xf32>
      %14 = tpu.matmul %12, %13, %cst {dimension_numbers = #tpu.dot_dimension_numbers<[1], [0], [0], [1], [0, 0, 1, 1], [], []>, precision = #tpu.contract_precision<fp32>} : vector<16x128xf32>, vector<128x4xf32>, vector<16x4xf32> -> vector<16x4xf32>
      %c0_8 = arith.constant 0 : index
      %c0_9 = arith.constant 0 : index
      %15 = vector.load %arg4[%c0_8, %c0_9] : memref<16x4xf32, #tpu.memory_space<vmem>>, vector<16x4xf32>
      %16 = arith.mulf %14, %15 : vector<16x4xf32>
      %17 = tpu.iota {dimensions = array<i32: 0>} : vector<16x4xi32>
      %18 = vector.broadcast %2 : i32 to vector<16x4xi32>
      %19 = arith.addi %18, %17 : vector<16x4xi32>
      %c16_i32_10 = arith.constant 16 : i32
      %20 = vector.broadcast %c16_i32_10 : i32 to vector<16x4xi32>
      %21 = arith.cmpi slt, %19, %20 : vector<16x4xi32>
      %cst_11 = arith.constant 0.000000e+00 : f32
      %22 = vector.broadcast %cst_11 : f32 to vector<16x4xf32>
      %23 = arith.select %21, %16, %22 : vector<16x4xi1>, vector<16x4xf32>
      %24 = vector.shape_cast %23 : vector<16x4xf32> to vector<1x16x4xf32>
      %cst_12 = arith.constant dense<0.000000e+00> : vector<1xf32>
      %25 = vector.multi_reduction <add>, %24, %cst_12 [1, 2] : vector<1x16x4xf32> to vector<1xf32>
      %26 = vector.shape_cast %25 : vector<1xf32> to vector<1x1x1xf32>
      %27 = vector.extract %26[0, 0, 0] : f32 from vector<1x1x1xf32>
      %28 = vector.broadcast %27 : f32 to vector<1x1xf32>
      %c0_13 = arith.constant 0 : index
      %c0_14 = arith.constant 0 : index
      %29 = vector.load %arg6[%c0_13, %c0_14] : memref<8x128xf32, #tpu.memory_space<vmem>>, vector<8x128xf32>
      %30 = vector.broadcast %28 : vector<1x1xf32> to vector<8x128xf32>
      %31 = arith.addf %29, %30 : vector<8x128xf32>
      %c0_15 = arith.constant 0 : index
      %c0_16 = arith.constant 0 : index
      %32 = vector.load %arg6[%c0_15, %c0_16] : memref<8x128xf32, #tpu.memory_space<vmem>>, vector<8x128xf32>
      tpu.vector_store %arg6[%c0_15, %c0_16], %31 {strides = array<i32>} : memref<8x128xf32, #tpu.memory_space<vmem>>, vector<8x128xf32>,
    } else {
    }
    return
  }
  func.func @transform_0(%arg0: i32, %arg1: i32) -> (i32, i32) {
    %c1_i32 = arith.constant 1 : i32
    %0 = arith.muli %arg0, %c1_i32 : i32
    %1 = arith.addi %0, %arg1 : i32
    %c0_i32 = arith.constant 0 : i32
    %2 = arith.minsi %1, %c0_i32 : i32
    %c0_i32_0 = arith.constant 0 : i32
    %c0_i32_1 = arith.constant 0 : i32
    return %2, %c0_i32_0 : i32, i32
  }
  func.func @transform_1(%arg0: i32, %arg1: i32) -> (i32, i32) {
    %c1_i32 = arith.constant 1 : i32
    %0 = arith.muli %arg0, %c1_i32 : i32
    %1 = arith.addi %0, %arg1 : i32
    %c0_i32 = arith.constant 0 : i32
    %2 = arith.minsi %1, %c0_i32 : i32
    %c0_i32_0 = arith.constant 0 : i32
    %c0_i32_1 = arith.constant 0 : i32
    return %2, %c0_i32_0 : i32, i32
  }
  func.func @transform_2(%arg0: i32, %arg1: i32) -> (i32, i32) {
    %c1_i32 = arith.constant 1 : i32
    %0 = arith.muli %arg0, %c1_i32 : i32
    %1 = arith.addi %0, %arg1 : i32
    %c0_i32 = arith.constant 0 : i32
    %c0_i32_0 = arith.constant 0 : i32
    return %1, %c0_i32 : i32, i32
  }
  func.func @transform_3(%arg0: i32, %arg1: i32) -> (i32, i32) {
    %c0_i32 = arith.constant 0 : i32
    %c0_i32_0 = arith.constant 0 : i32
    %c0_i32_1 = arith.constant 0 : i32
    return %c0_i32, %c0_i32_0 : i32, i32
  }
  func.func @transform_4(%arg0: i32, %arg1: i32) -> (i32, i32) {
    %c0_i32 = arith.constant 0 : i32
    %c0_i32_0 = arith.constant 0 : i32
    return %arg0, %c0_i32 : i32, i32
  }
}

</mosaic_0001>

<llo_original>
// kernel: tpu_custom_call.1
$region0: #{tpu_custom_call.1}
  #allocation0 [shape = 'u32[]', space=smem, size = 0x4, offset = 0x4, fixed_abs, tag = 'smem constant byte address 0x4 - core index']
  #allocation1 [shape = 'u32[144,128]{1,0:T(1,128)}', space=vmem, size = 0x12000, scoped, tag = 'internal scratch']
  %s0 = inlined_call_operand.vmem [shape: f32[16,128], index: 0, kind: input, shape index: {}]
  %s1 = inlined_call_operand.vmem [shape: f32[16,128], index: 1, kind: input, shape index: {}]
  %s2 = inlined_call_operand.vmem [shape: f32[32,4], index: 2, kind: input, shape index: {}]
  %s3 = inlined_call_operand.vmem [shape: f32[128,4], index: 3, kind: input, shape index: {}]
  %s4 = inlined_call_operand.hbm [shape: f32[16,128], index: 4, kind: output, shape index: {}]
  %s5 = sld [smem:[#allocation0]]
  $region57: #{tpu_custom_call.1} parent=0
    _
  %s7 = ssub.s32 1, %s5
  %s8 = scalar_select 0, %s7, %s5
  $region1: #{tpu_custom_call.1} parent=0
    #allocation2 [shape = 'u8[8192]{0}', space=vmem, size = 0x2000, scoped, tag = 'output window, operand 0']
    #allocation3 [shape = 's32[2]{0}', space=sflag, size = 0x8, scoped, tag = 'scoped memory for tpu_custom_call.1']
    %9 = vsyncpa [#allocation3], 0
    %s10 = scalar_lea.sflag [#allocation3], 1
    %11 = vsyncpa %s10, 0
    loop: start=0, step=1, limit=4
    $region2: #{tpu_custom_call.1} parent=1 // loop_pre_header
      _
    $region3: #{tpu_custom_call.1} parent=1 // loop_header
      %s13 = sphi 0, %s17
      %p14 = scmp.ge.s32.totalorder %s13, 4
      %s20 = sphi 0, %s32
      %s21 = sphi 0, %s28
      %s22 = sphi 0, %s20
      %s23 = sphi 0, %s21
      %s24 = sphi 0, %s22
      %s25 = sphi 0, %s23
      %s41 = sphi 0, %s43
      %s44 = sphi 0, %s41
      %s45 = sphi 0, %s44
      %s61 = sphi 0, %s45
      %s73 = sphi 0, %s75
      %s76 = sphi 0, %s73
      %s77 = sphi 0, %s76
      %s93 = sphi 0, %s77
      %s101 = sphi 0, %s103
      %s104 = sphi 0, %s101
      %s105 = sphi 0, %s104
      %s121 = sphi 0, %s105
      %s125 = sphi 0, %s125
      %s127 = sphi 0, %s125
      %s128 = sphi 0, %s127
      %s142 = sphi 0, %s128
      %s148 = sphi 0, %s150
      %s151 = sphi 0, %s148
      %s152 = sphi 0, %s151
      %s168 = sphi 0, %s152
    $region4: #{tpu_custom_call.1} parent=1 // loop_header_branch
      %16 = sbr.rel (%p14) target = $region8
    $region5: #{tpu_custom_call.1} parent=1 // loop_body
      %s18 = ssub.s32 %s13, 1
      %s19 = ssub.s32 %s13, 2
      %s26 = sadd.s32 1, %s21
      %p27 = scmp.ge.s32.totalorder %s26, 1
      %s28 = scalar_select %p27, 0, %s26
      %s29 = sadd.s32 1, %s20
      %s30 = scalar_select %p27, %s29, %s20
      %p31 = scmp.ge.s32.totalorder %s30, 2
      %s32 = scalar_select %p31, 0, %s30
      %s33 = sadd.s32 %s20, %s21
      %p34 = scmp.lt.s32.totalorder %s33, 0
      %s35 = scalar_select %p34, %s33, 0
      %s36 = sadd.s32 %s32, %s28
      %p37 = scmp.lt.s32.totalorder %s36, 0
      %s38 = scalar_select %p37, %s36, 0
      %s39 = ssub.s32 %s35, %s38
      %p40 = scmp.eq.s32.totalorder %s39, 0
      %s42 = sadd.s32 %s41, 1
      %s43 = scalar_select %p40, %s41, %s42
      %p46 = pneg %p40
      %p47 = scmp.eq.s32.totalorder %s13, 1
      %p48 = por %p46, %p47
      %p49 = scmp.ne.s32.totalorder %s41, %s44
      %p50 = scmp.eq.s32.totalorder %s13, 0
      %p51 = por %p49, %p50
      %p52 = scmp.ne.s32.totalorder %s41, %s44
      %p53 = scmp.eq.s32.totalorder %s18, 1
      %p54 = por %p52, %p53
      %p55 = scmp.ne.s32.totalorder %s44, %s45
      %p56 = scmp.eq.s32.totalorder %s18, 0
      %p57 = por %p55, %p56
      %p58 = scmp.ne.s32.totalorder %s44, %s45
      %p59 = scmp.eq.s32.totalorder %s19, 1
      %p60 = por %p58, %p59
      %p62 = scmp.ne.s32.totalorder %s45, %s61
      %p63 = scmp.eq.s32.totalorder %s19, 0
      %p64 = por %p62, %p63
      %s65 = sadd.s32 %s20, %s21
      %p66 = scmp.lt.s32.totalorder %s65, 0
      %s67 = scalar_select %p66, %s65, 0
      %s68 = sadd.s32 %s32, %s28
      %p69 = scmp.lt.s32.totalorder %s68, 0
      %s70 = scalar_select %p69, %s68, 0
      %s71 = ssub.s32 %s67, %s70
      %p72 = scmp.eq.s32.totalorder %s71, 0
      %s74 = sadd.s32 %s73, 1
      %s75 = scalar_select %p72, %s73, %s74
      %p78 = pneg %p72
      %p79 = scmp.eq.s32.totalorder %s13, 1
      %p80 = por %p78, %p79
      %p81 = scmp.ne.s32.totalorder %s73, %s76
      %p82 = scmp.eq.s32.totalorder %s13, 0
      %p83 = por %p81, %p82
      %p84 = scmp.ne.s32.totalorder %s73, %s76
      %p85 = scmp.eq.s32.totalorder %s18, 1
      %p86 = por %p84, %p85
      %p87 = scmp.ne.s32.totalorder %s76, %s77
      %p88 = scmp.eq.s32.totalorder %s18, 0
      %p89 = por %p87, %p88
      %p90 = scmp.ne.s32.totalorder %s76, %s77
      %p91 = scmp.eq.s32.totalorder %s19, 1
      %p92 = por %p90, %p91
      %p94 = scmp.ne.s32.totalorder %s77, %s93
      %p95 = scmp.eq.s32.totalorder %s19, 0
      %p96 = por %p94, %p95
      %s97 = sadd.s32 %s20, %s21
      %s98 = sadd.s32 %s32, %s28
      %s99 = ssub.s32 %s97, %s98
      %p100 = scmp.eq.s32.totalorder %s99, 0
      %s102 = sadd.s32 %s101, 1
      %s103 = scalar_select %p100, %s101, %s102
      %p106 = pneg %p100
      %p107 = scmp.eq.s32.totalorder %s13, 1
      %p108 = por %p106, %p107
      %p109 = scmp.ne.s32.totalorder %s101, %s104
      %p110 = scmp.eq.s32.totalorder %s13, 0
      %p111 = por %p109, %p110
      %p112 = scmp.ne.s32.totalorder %s101, %s104
      %p113 = scmp.eq.s32.totalorder %s18, 1
      %p114 = por %p112, %p113
      %p115 = scmp.ne.s32.totalorder %s104, %s105
      %p116 = scmp.eq.s32.totalorder %s18, 0
      %p117 = por %p115, %p116
      %p118 = scmp.ne.s32.totalorder %s104, %s105
      %p119 = scmp.eq.s32.totalorder %s19, 1
      %p120 = por %p118, %p119
      %p122 = scmp.ne.s32.totalorder %s105, %s121
      %p123 = scmp.eq.s32.totalorder %s19, 0
      %p124 = por %p122, %p123
      %s126 = sadd.s32 %s125, 1
      %p129 = scmp.eq.s32.totalorder %s13, 1
      %p130 = scmp.ne.s32.totalorder %s125, %s127
      %p131 = scmp.eq.s32.totalorder %s13, 0
      %p132 = por %p130, %p131
      %p133 = scmp.ne.s32.totalorder %s125, %s127
      %p134 = scmp.eq.s32.totalorder %s18, 1
      %p135 = por %p133, %p134
      %p136 = scmp.ne.s32.totalorder %s127, %s128
      %p137 = scmp.eq.s32.totalorder %s18, 0
      %p138 = por %p136, %p137
      %p139 = scmp.ne.s32.totalorder %s127, %s128
      %p140 = scmp.eq.s32.totalorder %s19, 1
      %p141 = por %p139, %p140
      %p143 = scmp.ne.s32.totalorder %s128, %s142
      %p144 = scmp.eq.s32.totalorder %s19, 0
      %p145 = por %p143, %p144
      %s146 = ssub.s32 %s20, %s32
      %p147 = scmp.eq.s32.totalorder %s146, 0
      %s149 = sadd.s32 %s148, 1
      %s150 = scalar_select %p147, %s148, %s149
      %p153 = pneg %p147
      %p154 = scmp.eq.s32.totalorder %s13, 1
      %p155 = por %p153, %p154
      %p156 = scmp.ne.s32.totalorder %s148, %s151
      %p157 = scmp.eq.s32.totalorder %s13, 0
      %p158 = por %p156, %p157
      %p159 = scmp.ne.s32.totalorder %s148, %s151
      %p160 = scmp.eq.s32.totalorder %s18, 1
      %p161 = por %p159, %p160
      %p162 = scmp.ne.s32.totalorder %s151, %s152
      %p163 = scmp.eq.s32.totalorder %s18, 0
      %p164 = por %p162, %p163
      %p165 = scmp.ne.s32.totalorder %s151, %s152
      %p166 = scmp.eq.s32.totalorder %s19, 1
      %p167 = por %p165, %p166
      %p169 = scmp.ne.s32.totalorder %s152, %s168
      %p170 = scmp.eq.s32.totalorder %s19, 0
      %p171 = por %p169, %p170
      %p172 = scmp.le.s32.totalorder 1, %s13
      %p173 = scmp.lt.s32.totalorder %s13, 3
      %p174 = pnand %p172, %p173
      %p175 = pneg %p174
      // Predicated region
      $region9: #{tpu_custom_call.1} parent=5 // pred_check
        _
      $region10: #{tpu_custom_call.1} parent=5 // pred_check_branch
        %177 = sbr.rel (%p174) target = $region12
      $region11: #{tpu_custom_call.1} parent=5 // pred_region
        %s178 = ssub.s32 %s13, 1
        // Predicated region
        $region13: #{tpu_custom_call.1} parent=11 // pred_check
          %p179 = pneg %p138
        $region14: #{tpu_custom_call.1} parent=11 // pred_check_branch
          %181 = sbr.rel (%p179) target = $region16
        $region15: #{tpu_custom_call.1} parent=11 // pred_region
          _
        $region16: #{tpu_custom_call.1} parent=11 // pred_fallthru
          _
      $region12: #{tpu_custom_call.1} parent=5 // pred_fallthru
        _
      %p182 = scmp.lt.s32.totalorder %s13, 2
      // Predicated region
      $region17: #{tpu_custom_call.1} parent=5 // pred_check
        %p183 = pneg %p182
      $region18: #{tpu_custom_call.1} parent=5 // pred_check_branch
        %185 = sbr.rel (%p183) target = $region20
      $region19: #{tpu_custom_call.1} parent=5 // pred_region
        // Predicated region
        $region21: #{tpu_custom_call.1} parent=19 // pred_check
          %p186 = pneg %p51
        $region22: #{tpu_custom_call.1} parent=19 // pred_check_branch
          %188 = sbr.rel (%p186) target = $region24
        $region23: #{tpu_custom_call.1} parent=19 // pred_region
          %s189 = sadd.s32 %s20, %s21
          %p190 = scmp.lt.s32.totalorder %s189, 0
          %s191 = scalar_select %p190, %s189, 0
          %s192 = smul.u32 2, %s191
          %p193 = scmp.lt.s32.totalorder %s192, 1
          %s194 = scalar_select %p193, %s192, 1
          %s195 = smul.addr %s194, 8
          %s196 = scalar_lea.vmem %s0, %s195
          %s197 = sadd.s32 %s20, %s21
          %p198 = scmp.lt.s32.totalorder %s197, 0
          %s199 = scalar_select %p198, %s197, 0
          %s200 = smul.u32 2, %s199
        $region24: #{tpu_custom_call.1} parent=19 // pred_fallthru
          _
        // Predicated region
        $region25: #{tpu_custom_call.1} parent=19 // pred_check
          %p201 = pneg %p83
        $region26: #{tpu_custom_call.1} parent=19 // pred_check_branch
          %203 = sbr.rel (%p201) target = $region28
        $region27: #{tpu_custom_call.1} parent=19 // pred_region
          %s204 = sadd.s32 %s20, %s21
          %p205 = scmp.lt.s32.totalorder %s204, 0
          %s206 = scalar_select %p205, %s204, 0
          %s207 = smul.u32 2, %s206
          %p208 = scmp.lt.s32.totalorder %s207, 1
          %s209 = scalar_select %p208, %s207, 1
          %s210 = smul.addr %s209, 8
          %s211 = scalar_lea.vmem %s1, %s210
          %s212 = sadd.s32 %s20, %s21
          %p213 = scmp.lt.s32.totalorder %s212, 0
          %s214 = scalar_select %p213, %s212, 0
          %s215 = smul.u32 2, %s214
        $region28: #{tpu_custom_call.1} parent=19 // pred_fallthru
          _
        // Predicated region
        $region29: #{tpu_custom_call.1} parent=19 // pred_check
          %p216 = pneg %p111
        $region30: #{tpu_custom_call.1} parent=19 // pred_check_branch
          %218 = sbr.rel (%p216) target = $region32
        $region31: #{tpu_custom_call.1} parent=19 // pred_region
          %s219 = sadd.s32 %s20, %s21
          %s220 = smul.u32 2, %s219
          %p221 = scmp.lt.s32.totalorder %s220, 3
          %s222 = scalar_select %p221, %s220, 3
          %s223 = smul.addr %s222, 8
          %s224 = scalar_lea.vmem %s2, %s223
          %s225 = sadd.s32 %s20, %s21
          %s226 = smul.u32 2, %s225
        $region32: #{tpu_custom_call.1} parent=19 // pred_fallthru
          _
      $region20: #{tpu_custom_call.1} parent=5 // pred_fallthru
        _
      %p227 = scmp.le.s32.totalorder 1, %s13
      %p228 = scmp.lt.s32.totalorder %s13, 3
      %p229 = pnand %p227, %p228
      %p230 = pneg %p229
      // Predicated region
      $region33: #{tpu_custom_call.1} parent=5 // pred_check
        _
      $region34: #{tpu_custom_call.1} parent=5 // pred_check_branch
        %232 = sbr.rel (%p229) target = $region36
      $region35: #{tpu_custom_call.1} parent=5 // pred_region
        %s233 = ssub.s32 %s13, 1
        %s234 = sadd.s32 %s22, %s23
        %p235 = scmp.lt.s32.totalorder %s234, 0
        %s236 = scalar_select %p235, %s234, 0
        %s237 = smul.u32 2, %s236
        %p238 = scmp.lt.s32.totalorder %s237, 1
        %s239 = scalar_select %p238, %s237, 1
        %s240 = smul.addr %s239, 8
        %s241 = scalar_lea.vmem %s0, %s240
        %p242 = pneg %p57
        %p243 = pneg %p54
        %s244 = sadd.s32 %s22, %s23
        %p245 = scmp.lt.s32.totalorder %s244, 0
        %s246 = scalar_select %p245, %s244, 0
        %s247 = smul.u32 2, %s246
        %p248 = scmp.lt.s32.totalorder %s247, 1
        %s249 = scalar_select %p248, %s247, 1
        %s250 = smul.addr %s249, 8
        %s251 = scalar_lea.vmem %s1, %s250
        %p252 = pneg %p89
        %p253 = pneg %p86
        %s254 = sadd.s32 %s22, %s23
        %s255 = smul.u32 2, %s254
        %p256 = scmp.lt.s32.totalorder %s255, 3
        %s257 = scalar_select %p256, %s255, 3
        %s258 = smul.addr %s257, 8
        %s259 = scalar_lea.vmem %s2, %s258
        %p260 = pneg %p117
        %p261 = pneg %p114
        %p262 = pneg %p138
        %p263 = pneg %p135
        %p264 = pneg %p164
        %p265 = pneg %p161
        %s266 = sand.u32 %s151, 1
        %s267 = scalar_lea.sflag [#allocation3], %s266
        %s268 = sand.u32 %s151, 1
        %s269 = smul.addr %s268, 8
        %s270 = scalar_lea.vmem [#allocation2], %s269
        %s271 = sadd.s32 %s22, %s23
        %p272 = scmp.lt.s32.totalorder %s271, 0
        %s273 = scalar_select %p272, %s271, 0
        %s274 = smul.u32 2, %s273
        %p275 = scmp.lt.s32.totalorder %s274, 1
        %s276 = scalar_select %p275, %s274, 1
        %s277 = smul.addr %s276, 8
        %s278 = scalar_lea.vmem %s0, %s277
        %s279 = sadd.s32 %s22, %s23
        %p280 = scmp.lt.s32.totalorder %s279, 0
        %s281 = scalar_select %p280, %s279, 0
        %s282 = smul.u32 2, %s281
        %s283 = sadd.s32 %s22, %s23
        %p284 = scmp.lt.s32.totalorder %s283, 0
        %s285 = scalar_select %p284, %s283, 0
        %s286 = smul.u32 2, %s285
        %p287 = scmp.lt.s32.totalorder %s286, 1
        %s288 = scalar_select %p287, %s286, 1
        %s289 = smul.addr %s288, 8
        %s290 = scalar_lea.vmem %s1, %s289
        %s291 = sadd.s32 %s22, %s23
        %p292 = scmp.lt.s32.totalorder %s291, 0
        %s293 = scalar_select %p292, %s291, 0
        %s294 = smul.u32 2, %s293
        %s295 = sadd.s32 %s22, %s23
        %s296 = smul.u32 2, %s295
        %p297 = scmp.lt.s32.totalorder %s296, 3
        %s298 = scalar_select %p297, %s296, 3
        %s299 = smul.addr %s298, 8
        %s300 = scalar_lea.vmem %s2, %s299
        %s301 = sadd.s32 %s22, %s23
        %s302 = smul.u32 2, %s301
        %s303 = sadd.s32 %s22, %s23
        %s304 = smul.u32 %s303, 16
        %p305 = scmp.eq.s32.totalorder %s23, 0
        // Predicated region
        $region37: #{tpu_custom_call.1} parent=35 // pred_check
          %p306 = pneg %p305
        $region38: #{tpu_custom_call.1} parent=35 // pred_check_branch
          %308 = sbr.rel (%p306) target = $region40
        $region39: #{tpu_custom_call.1} parent=35 // pred_region
          %309 = vst [vmem:[%s270] sm:$0xff] 0.0
        $region40: #{tpu_custom_call.1} parent=35 // pred_fallthru
          _
        %p310 = scmp.lt.s32.totalorder %s304, 16
        // Predicated region
        $region41: #{tpu_custom_call.1} parent=35 // pred_check
          %p311 = pneg %p310
        $region42: #{tpu_custom_call.1} parent=35 // pred_check_branch
          %313 = sbr.rel (%p311) target = $region44
        $region43: #{tpu_custom_call.1} parent=35 // pred_region
          %v314 = vld [vmem:[%s278] sm:$0xff]
          %v315 = vld [vmem:[%s278 + $0x8] sm:$0xff]
          %v316 = vld [vmem:[%s290] sm:$0xff]
          %v317 = vld [vmem:[%s290 + $0x8] sm:$0xff]
          %v318 = vsub.f32 %v314, %v316
          %v319 = vsub.f32 %v315, %v317
          %v320 = vand.u32 2147483647, %v318
          %v321 = vand.u32 2147483647, %v319
          %v322 = vld [vmem:[%s3] sm:$0xff]
          %v323 = vld [vmem:[%s3 + $0x8] sm:$0xff]
          %v324 = vld [vmem:[%s3 + $0x10] sm:$0xff]
          %v325 = vld [vmem:[%s3 + $0x18] sm:$0xff]
          %v326 = vld [vmem:[%s3 + $0x20] sm:$0xff]
          %v327 = vld [vmem:[%s3 + $0x28] sm:$0xff]
          %v328 = vld [vmem:[%s3 + $0x30] sm:$0xff]
          %v329 = vld [vmem:[%s3 + $0x38] sm:$0xff]
          %v330 = vld [vmem:[%s3 + $0x40] sm:$0xff]
          %v331 = vld [vmem:[%s3 + $0x48] sm:$0xff]
          %v332 = vld [vmem:[%s3 + $0x50] sm:$0xff]
          %v333 = vld [vmem:[%s3 + $0x58] sm:$0xff]
          %v334 = vld [vmem:[%s3 + $0x60] sm:$0xff]
          %v335 = vld [vmem:[%s3 + $0x68] sm:$0xff]
          %v336 = vld [vmem:[%s3 + $0x70] sm:$0xff]
          %v337 = vld [vmem:[%s3 + $0x78] sm:$0xff]
          %338 = vmatprep.subr.mxu0 0.0
          %v339 = vand.u32 %v322, 4294901760
          %340 = vmatpush1.msra.mxu0 %v339
          %341 = vmatprep.subr.mxu0 0.0
          %v342 = vand.u32 %v323, 4294901760
          %343 = vmatpush1.msra.mxu0 %v342
          %344 = vmatprep.subr.mxu0 0.0
          %v345 = vand.u32 %v324, 4294901760
          %346 = vmatpush1.msra.mxu0 %v345
          %347 = vmatprep.subr.mxu0 0.0
          %v348 = vand.u32 %v325, 4294901760
          %349 = vmatpush1.msra.mxu0 %v348
          %350 = vmatprep.subr.mxu0 0.0
          %v351 = vand.u32 %v326, 4294901760
          %352 = vmatpush1.msra.mxu0 %v351
          %353 = vmatprep.subr.mxu0 0.0
          %v354 = vand.u32 %v327, 4294901760
          %355 = vmatpush1.msra.mxu0 %v354
          %356 = vmatprep.subr.mxu0 0.0
          %v357 = vand.u32 %v328, 4294901760
          %358 = vmatpush1.msra.mxu0 %v357
          %359 = vmatprep.subr.mxu0 0.0
          %v360 = vand.u32 %v329, 4294901760
          %361 = vmatpush1.msra.mxu0 %v360
          %362 = vmatprep.subr.mxu0 0.0
          %v363 = vand.u32 %v330, 4294901760
          %364 = vmatpush1.msra.mxu0 %v363
          %365 = vmatprep.subr.mxu0 0.0
          %v366 = vand.u32 %v331, 4294901760
          %367 = vmatpush1.msra.mxu0 %v366
          %368 = vmatprep.subr.mxu0 0.0
          %v369 = vand.u32 %v332, 4294901760
          %370 = vmatpush1.msra.mxu0 %v369
          %371 = vmatprep.subr.mxu0 0.0
          %v372 = vand.u32 %v333, 4294901760
          %373 = vmatpush1.msra.mxu0 %v372
          %374 = vmatprep.subr.mxu0 0.0
          %v375 = vand.u32 %v334, 4294901760
          %376 = vmatpush1.msra.mxu0 %v375
          %377 = vmatprep.subr.mxu0 0.0
          %v378 = vand.u32 %v335, 4294901760
          %379 = vmatpush1.msra.mxu0 %v378
          %380 = vmatprep.subr.mxu0 0.0
          %v381 = vand.u32 %v336, 4294901760
          %382 = vmatpush1.msra.mxu0 %v381
          %383 = vmatprep.subr.mxu0 0.0
          %v384 = vand.u32 %v337, 4294901760
          %385 = vmatpush1.msra.mxu0 %v384
          %386 = vmatprep.subr.mxu0 0.0
          %387 = vmatpush1.msra.mxu0 0.0
          %388 = vmatprep.subr.mxu0 0.0
          %389 = vmatpush1.msra.mxu0 0.0
          %390 = vmatprep.subr.mxu0 0.0
          %391 = vmatpush1.msra.mxu0 0.0
          %392 = vmatprep.subr.mxu0 0.0
          %393 = vmatpush1.msra.mxu0 0.0
          %394 = vmatprep.subr.mxu0 0.0
          %395 = vmatpush1.msra.mxu0 0.0
          %396 = vmatprep.subr.mxu0 0.0
          %397 = vmatpush1.msra.mxu0 0.0
          %398 = vmatprep.subr.mxu0 0.0
          %399 = vmatpush1.msra.mxu0 0.0
          %400 = vmatprep.subr.mxu0 0.0
          %401 = vmatpush1.msra.mxu0 0.0
          %402 = vmatprep.subr.mxu0 0.0
          %403 = vmatpush1.msra.mxu0 0.0
          %404 = vmatprep.subr.mxu0 0.0
          %405 = vmatpush1.msra.mxu0 0.0
          %406 = vmatprep.subr.mxu0 0.0
          %407 = vmatpush1.msra.mxu0 0.0
          %408 = vmatprep.subr.mxu0 0.0
          %409 = vmatpush1.msra.mxu0 0.0
          %410 = vmatprep.subr.mxu0 0.0
          %411 = vmatpush1.msra.mxu0 0.0
          %412 = vmatprep.subr.mxu0 0.0
          %413 = vmatpush1.msra.mxu0 0.0
          %414 = vmatprep.subr.mxu0 0.0
          %415 = vmatpush1.msra.mxu0 0.0
          %416 = vmatprep.subr.mxu0 0.0
          %417 = vmatpush1.msra.mxu0 0.0
          %418 = vmatprep.mubr.f32.mxu0 0.0
          %v419 = vand.u32 %v320, 4294901760
          %v420 = vsub.f32 %v320, %v419
          %v421 = vand.u32 %v420, 4294901760
          %v422 = vsub.f32 %v420, %v421
          %v423 = vand.u32 %v422, 4294901760
          %424 = vmatmul.mubr.f32.gmra.mrb[0].mxu0 %v423
          %v425 = vpop.f32.mrb[0].mxu0
          %v426 = vadd.f32 0.0, %v425
          %v427 = vpop.f32.mrb[0].mxu0
          %428 = vmatprep.mubr.f32.mxu0 0.0
          %v429 = vand.u32 %v321, 4294901760
          %v430 = vsub.f32 %v321, %v429
          %v431 = vand.u32 %v430, 4294901760
          %v432 = vsub.f32 %v430, %v431
          %v433 = vand.u32 %v432, 4294901760
          %434 = vmatmul.mubr.f32.gmra.mrb[0].mxu0 %v433
          %v435 = vpop.f32.mrb[0].mxu0
          %v436 = vadd.f32 0.0, %v435
          %v437 = vpop.f32.mrb[0].mxu0
          %438 = vdwg.mxu0
          %439 = vmatprep.subr.mxu0 0.0
          %v440 = vand.u32 %v322, 4294901760
          %v441 = vsub.f32 %v322, %v440
          %v442 = vand.u32 %v441, 4294901760
          %v443 = vsub.f32 %v441, %v442
          %v444 = vand.u32 %v443, 4294901760
          %445 = vmatpush1.msra.mxu0 %v444
          %446 = vmatprep.subr.mxu0 0.0
          %v447 = vand.u32 %v323, 4294901760
          %v448 = vsub.f32 %v323, %v447
          %v449 = vand.u32 %v448, 4294901760
          %v450 = vsub.f32 %v448, %v449
          %v451 = vand.u32 %v450, 4294901760
          %452 = vmatpush1.msra.mxu0 %v451
          %453 = vmatprep.subr.mxu0 0.0
          %v454 = vand.u32 %v324, 4294901760
          %v455 = vsub.f32 %v324, %v454
          %v456 = vand.u32 %v455, 4294901760
          %v457 = vsub.f32 %v455, %v456
          %v458 = vand.u32 %v457, 4294901760
          %459 = vmatpush1.msra.mxu0 %v458
          %460 = vmatprep.subr.mxu0 0.0
          %v461 = vand.u32 %v325, 4294901760
          %v462 = vsub.f32 %v325, %v461
          %v463 = vand.u32 %v462, 4294901760
          %v464 = vsub.f32 %v462, %v463
          %v465 = vand.u32 %v464, 4294901760
          %466 = vmatpush1.msra.mxu0 %v465
          %467 = vmatprep.subr.mxu0 0.0
          %v468 = vand.u32 %v326, 4294901760
          %v469 = vsub.f32 %v326, %v468
          %v470 = vand.u32 %v469, 4294901760
          %v471 = vsub.f32 %v469, %v470
          %v472 = vand.u32 %v471, 4294901760
          %473 = vmatpush1.msra.mxu0 %v472
          %474 = vmatprep.subr.mxu0 0.0
          %v475 = vand.u32 %v327, 4294901760
          %v476 = vsub.f32 %v327, %v475
          %v477 = vand.u32 %v476, 4294901760
          %v478 = vsub.f32 %v476, %v477
          %v479 = vand.u32 %v478, 4294901760
          %480 = vmatpush1.msra.mxu0 %v479
          %481 = vmatprep.subr.mxu0 0.0
          %v482 = vand.u32 %v328, 4294901760
          %v483 = vsub.f32 %v328, %v482
          %v484 = vand.u32 %v483, 4294901760
          %v485 = vsub.f32 %v483, %v484
          %v486 = vand.u32 %v485, 4294901760
          %487 = vmatpush1.msra.mxu0 %v486
          %488 = vmatprep.subr.mxu0 0.0
          %v489 = vand.u32 %v329, 4294901760
          %v490 = vsub.f32 %v329, %v489
          %v491 = vand.u32 %v490, 4294901760
          %v492 = vsub.f32 %v490, %v491
          %v493 = vand.u32 %v492, 4294901760
          %494 = vmatpush1.msra.mxu0 %v493
          %495 = vmatprep.subr.mxu0 0.0
          %v496 = vand.u32 %v330, 4294901760
          %v497 = vsub.f32 %v330, %v496
          %v498 = vand.u32 %v497, 4294901760
          %v499 = vsub.f32 %v497, %v498
          %v500 = vand.u32 %v499, 4294901760
          %501 = vmatpush1.msra.mxu0 %v500
          %502 = vmatprep.subr.mxu0 0.0
          %v503 = vand.u32 %v331, 4294901760
          %v504 = vsub.f32 %v331, %v503
          %v505 = vand.u32 %v504, 4294901760
          %v506 = vsub.f32 %v504, %v505
          %v507 = vand.u32 %v506, 4294901760
          %508 = vmatpush1.msra.mxu0 %v507
          %509 = vmatprep.subr.mxu0 0.0
          %v510 = vand.u32 %v332, 4294901760
          %v511 = vsub.f32 %v332, %v510
          %v512 = vand.u32 %v511, 4294901760
          %v513 = vsub.f32 %v511, %v512
          %v514 = vand.u32 %v513, 4294901760
          %515 = vmatpush1.msra.mxu0 %v514
          %516 = vmatprep.subr.mxu0 0.0
          %v517 = vand.u32 %v333, 4294901760
          %v518 = vsub.f32 %v333, %v517
          %v519 = vand.u32 %v518, 4294901760
          %v520 = vsub.f32 %v518, %v519
          %v521 = vand.u32 %v520, 4294901760
          %522 = vmatpush1.msra.mxu0 %v521
          %523 = vmatprep.subr.mxu0 0.0
          %v524 = vand.u32 %v334, 4294901760
          %v525 = vsub.f32 %v334, %v524
          %v526 = vand.u32 %v525, 4294901760
          %v527 = vsub.f32 %v525, %v526
          %v528 = vand.u32 %v527, 4294901760
          %529 = vmatpush1.msra.mxu0 %v528
          %530 = vmatprep.subr.mxu0 0.0
          %v531 = vand.u32 %v335, 4294901760
          %v532 = vsub.f32 %v335, %v531
          %v533 = vand.u32 %v532, 4294901760
          %v534 = vsub.f32 %v532, %v533
          %v535 = vand.u32 %v534, 4294901760
          %536 = vmatpush1.msra.mxu0 %v535
          %537 = vmatprep.subr.mxu0 0.0
          %v538 = vand.u32 %v336, 4294901760
          %v539 = vsub.f32 %v336, %v538
          %v540 = vand.u32 %v539, 4294901760
          %v541 = vsub.f32 %v539, %v540
          %v542 = vand.u32 %v541, 4294901760
          %543 = vmatpush1.msra.mxu0 %v542
          %544 = vmatprep.subr.mxu0 0.0
          %v545 = vand.u32 %v337, 4294901760
          %v546 = vsub.f32 %v337, %v545
          %v547 = vand.u32 %v546, 4294901760
          %v548 = vsub.f32 %v546, %v547
          %v549 = vand.u32 %v548, 4294901760
          %550 = vmatpush1.msra.mxu0 %v549
          %551 = vmatprep.subr.mxu0 0.0
          %552 = vmatpush1.msra.mxu0 0.0
          %553 = vmatprep.subr.mxu0 0.0
          %554 = vmatpush1.msra.mxu0 0.0
          %555 = vmatprep.subr.mxu0 0.0
          %556 = vmatpush1.msra.mxu0 0.0
          %557 = vmatprep.subr.mxu0 0.0
          %558 = vmatpush1.msra.mxu0 0.0
          %559 = vmatprep.subr.mxu0 0.0
          %560 = vmatpush1.msra.mxu0 0.0
          %561 = vmatprep.subr.mxu0 0.0
          %562 = vmatpush1.msra.mxu0 0.0
          %563 = vmatprep.subr.mxu0 0.0
          %564 = vmatpush1.msra.mxu0 0.0
          %565 = vmatprep.subr.mxu0 0.0
          %566 = vmatpush1.msra.mxu0 0.0
          %567 = vmatprep.subr.mxu0 0.0
          %568 = vmatpush1.msra.mxu0 0.0
          %569 = vmatprep.subr.mxu0 0.0
          %570 = vmatpush1.msra.mxu0 0.0
          %571 = vmatprep.subr.mxu0 0.0
          %572 = vmatpush1.msra.mxu0 0.0
          %573 = vmatprep.subr.mxu0 0.0
          %574 = vmatpush1.msra.mxu0 0.0
          %575 = vmatprep.subr.mxu0 0.0
          %576 = vmatpush1.msra.mxu0 0.0
          %577 = vmatprep.subr.mxu0 0.0
          %578 = vmatpush1.msra.mxu0 0.0
          %579 = vmatprep.subr.mxu0 0.0
          %580 = vmatpush1.msra.mxu0 0.0
          %581 = vmatprep.subr.mxu0 0.0
          %582 = vmatpush1.msra.mxu0 0.0
          %583 = vmatprep.mubr.f32.mxu0 0.0
          %v584 = vand.u32 %v320, 4294901760
          %585 = vmatmul.mubr.f32.gmra.mrb[0].mxu0 %v584
          %v586 = vpop.f32.mrb[0].mxu0
          %v587 = vadd.f32 %v426, %v586
          %v588 = vpop.f32.mrb[0].mxu0
          %589 = vmatprep.mubr.f32.mxu0 0.0
          %v590 = vand.u32 %v321, 4294901760
          %591 = vmatmul.mubr.f32.gmra.mrb[0].mxu0 %v590
          %v592 = vpop.f32.mrb[0].mxu0
          %v593 = vadd.f32 %v436, %v592
          %v594 = vpop.f32.mrb[0].mxu0
          %595 = vdwg.mxu0
          %596 = vmatprep.subr.mxu0 0.0
          %v597 = vand.u32 %v322, 4294901760
          %v598 = vsub.f32 %v322, %v597
          %599 = vmatpush1.msra.mxu0 %v598
          %600 = vmatprep.subr.mxu0 0.0
          %v601 = vand.u32 %v323, 4294901760
          %v602 = vsub.f32 %v323, %v601
          %603 = vmatpush1.msra.mxu0 %v602
          %604 = vmatprep.subr.mxu0 0.0
          %v605 = vand.u32 %v324, 4294901760
          %v606 = vsub.f32 %v324, %v605
          %607 = vmatpush1.msra.mxu0 %v606
          %608 = vmatprep.subr.mxu0 0.0
          %v609 = vand.u32 %v325, 4294901760
          %v610 = vsub.f32 %v325, %v609
          %611 = vmatpush1.msra.mxu0 %v610
          %612 = vmatprep.subr.mxu0 0.0
          %v613 = vand.u32 %v326, 4294901760
          %v614 = vsub.f32 %v326, %v613
          %615 = vmatpush1.msra.mxu0 %v614
          %616 = vmatprep.subr.mxu0 0.0
          %v617 = vand.u32 %v327, 4294901760
          %v618 = vsub.f32 %v327, %v617
          %619 = vmatpush1.msra.mxu0 %v618
          %620 = vmatprep.subr.mxu0 0.0
          %v621 = vand.u32 %v328, 4294901760
          %v622 = vsub.f32 %v328, %v621
          %623 = vmatpush1.msra.mxu0 %v622
          %624 = vmatprep.subr.mxu0 0.0
          %v625 = vand.u32 %v329, 4294901760
          %v626 = vsub.f32 %v329, %v625
          %627 = vmatpush1.msra.mxu0 %v626
          %628 = vmatprep.subr.mxu0 0.0
          %v629 = vand.u32 %v330, 4294901760
          %v630 = vsub.f32 %v330, %v629
          %631 = vmatpush1.msra.mxu0 %v630
          %632 = vmatprep.subr.mxu0 0.0
          %v633 = vand.u32 %v331, 4294901760
          %v634 = vsub.f32 %v331, %v633
          %635 = vmatpush1.msra.mxu0 %v634
          %636 = vmatprep.subr.mxu0 0.0
          %v637 = vand.u32 %v332, 4294901760
          %v638 = vsub.f32 %v332, %v637
          %639 = vmatpush1.msra.mxu0 %v638
          %640 = vmatprep.subr.mxu0 0.0
          %v641 = vand.u32 %v333, 4294901760
          %v642 = vsub.f32 %v333, %v641
          %643 = vmatpush1.msra.mxu0 %v642
          %644 = vmatprep.subr.mxu0 0.0
          %v645 = vand.u32 %v334, 4294901760
          %v646 = vsub.f32 %v334, %v645
          %647 = vmatpush1.msra.mxu0 %v646
          %648 = vmatprep.subr.mxu0 0.0
          %v649 = vand.u32 %v335, 4294901760
          %v650 = vsub.f32 %v335, %v649
          %651 = vmatpush1.msra.mxu0 %v650
          %652 = vmatprep.subr.mxu0 0.0
          %v653 = vand.u32 %v336, 4294901760
          %v654 = vsub.f32 %v336, %v653
          %655 = vmatpush1.msra.mxu0 %v654
          %656 = vmatprep.subr.mxu0 0.0
          %v657 = vand.u32 %v337, 4294901760
          %v658 = vsub.f32 %v337, %v657
          %659 = vmatpush1.msra.mxu0 %v658
          %660 = vmatprep.subr.mxu0 0.0
          %661 = vmatpush1.msra.mxu0 0.0
          %662 = vmatprep.subr.mxu0 0.0
          %663 = vmatpush1.msra.mxu0 0.0
          %664 = vmatprep.subr.mxu0 0.0
          %665 = vmatpush1.msra.mxu0 0.0
          %666 = vmatprep.subr.mxu0 0.0
          %667 = vmatpush1.msra.mxu0 0.0
          %668 = vmatprep.subr.mxu0 0.0
          %669 = vmatpush1.msra.mxu0 0.0
          %670 = vmatprep.subr.mxu0 0.0
          %671 = vmatpush1.msra.mxu0 0.0
          %672 = vmatprep.subr.mxu0 0.0
          %673 = vmatpush1.msra.mxu0 0.0
          %674 = vmatprep.subr.mxu0 0.0
          %675 = vmatpush1.msra.mxu0 0.0
          %676 = vmatprep.subr.mxu0 0.0
          %677 = vmatpush1.msra.mxu0 0.0
          %678 = vmatprep.subr.mxu0 0.0
          %679 = vmatpush1.msra.mxu0 0.0
          %680 = vmatprep.subr.mxu0 0.0
          %681 = vmatpush1.msra.mxu0 0.0
          %682 = vmatprep.subr.mxu0 0.0
          %683 = vmatpush1.msra.mxu0 0.0
          %684 = vmatprep.subr.mxu0 0.0
          %685 = vmatpush1.msra.mxu0 0.0
          %686 = vmatprep.subr.mxu0 0.0
          %687 = vmatpush1.msra.mxu0 0.0
          %688 = vmatprep.subr.mxu0 0.0
          %689 = vmatpush1.msra.mxu0 0.0
          %690 = vmatprep.subr.mxu0 0.0
          %691 = vmatpush1.msra.mxu0 0.0
          %692 = vmatprep.mubr.f32.mxu0 0.0
          %v693 = vand.u32 %v320, 4294901760
          %v694 = vsub.f32 %v320, %v693
          %695 = vmatmul.mubr.f32.gmra.mrb[0].mxu0 %v694
          %v696 = vpop.f32.mrb[0].mxu0
          %v697 = vadd.f32 %v587, %v696
          %v698 = vpop.f32.mrb[0].mxu0
          %699 = vmatprep.mubr.f32.mxu0 0.0
          %v700 = vand.u32 %v321, 4294901760
          %v701 = vsub.f32 %v321, %v700
          %702 = vmatmul.mubr.f32.gmra.mrb[0].mxu0 %v701
          %v703 = vpop.f32.mrb[0].mxu0
          %v704 = vadd.f32 %v593, %v703
          %v705 = vpop.f32.mrb[0].mxu0
          %706 = vdwg.mxu0
          %707 = vmatprep.subr.mxu0 0.0
          %v708 = vand.u32 %v322, 4294901760
          %709 = vmatpush1.msra.mxu0 %v708
          %710 = vmatprep.subr.mxu0 0.0
          %v711 = vand.u32 %v323, 4294901760
          %712 = vmatpush1.msra.mxu0 %v711
          %713 = vmatprep.subr.mxu0 0.0
          %v714 = vand.u32 %v324, 4294901760
          %715 = vmatpush1.msra.mxu0 %v714
          %716 = vmatprep.subr.mxu0 0.0
          %v717 = vand.u32 %v325, 4294901760
          %718 = vmatpush1.msra.mxu0 %v717
          %719 = vmatprep.subr.mxu0 0.0
          %v720 = vand.u32 %v326, 4294901760
          %721 = vmatpush1.msra.mxu0 %v720
          %722 = vmatprep.subr.mxu0 0.0
          %v723 = vand.u32 %v327, 4294901760
          %724 = vmatpush1.msra.mxu0 %v723
          %725 = vmatprep.subr.mxu0 0.0
          %v726 = vand.u32 %v328, 4294901760
          %727 = vmatpush1.msra.mxu0 %v726
          %728 = vmatprep.subr.mxu0 0.0
          %v729 = vand.u32 %v329, 4294901760
          %730 = vmatpush1.msra.mxu0 %v729
          %731 = vmatprep.subr.mxu0 0.0
          %v732 = vand.u32 %v330, 4294901760
          %733 = vmatpush1.msra.mxu0 %v732
          %734 = vmatprep.subr.mxu0 0.0
          %v735 = vand.u32 %v331, 4294901760
          %736 = vmatpush1.msra.mxu0 %v735
          %737 = vmatprep.subr.mxu0 0.0
          %v738 = vand.u32 %v332, 4294901760
          %739 = vmatpush1.msra.mxu0 %v738
          %740 = vmatprep.subr.mxu0 0.0
          %v741 = vand.u32 %v333, 4294901760
          %742 = vmatpush1.msra.mxu0 %v741
          %743 = vmatprep.subr.mxu0 0.0
          %v744 = vand.u32 %v334, 4294901760
          %745 = vmatpush1.msra.mxu0 %v744
          %746 = vmatprep.subr.mxu0 0.0
          %v747 = vand.u32 %v335, 4294901760
          %748 = vmatpush1.msra.mxu0 %v747
          %749 = vmatprep.subr.mxu0 0.0
          %v750 = vand.u32 %v336, 4294901760
          %751 = vmatpush1.msra.mxu0 %v750
          %752 = vmatprep.subr.mxu0 0.0
          %v753 = vand.u32 %v337, 4294901760
          %754 = vmatpush1.msra.mxu0 %v753
          %755 = vmatprep.subr.mxu0 0.0
          %756 = vmatpush1.msra.mxu0 0.0
          %757 = vmatprep.subr.mxu0 0.0
          %758 = vmatpush1.msra.mxu0 0.0
          %759 = vmatprep.subr.mxu0 0.0
          %760 = vmatpush1.msra.mxu0 0.0
          %761 = vmatprep.subr.mxu0 0.0
          %762 = vmatpush1.msra.mxu0 0.0
          %763 = vmatprep.subr.mxu0 0.0
          %764 = vmatpush1.msra.mxu0 0.0
          %765 = vmatprep.subr.mxu0 0.0
          %766 = vmatpush1.msra.mxu0 0.0
          %767 = vmatprep.subr.mxu0 0.0
          %768 = vmatpush1.msra.mxu0 0.0
          %769 = vmatprep.subr.mxu0 0.0
          %770 = vmatpush1.msra.mxu0 0.0
          %771 = vmatprep.subr.mxu0 0.0
          %772 = vmatpush1.msra.mxu0 0.0
          %773 = vmatprep.subr.mxu0 0.0
          %774 = vmatpush1.msra.mxu0 0.0
          %775 = vmatprep.subr.mxu0 0.0
          %776 = vmatpush1.msra.mxu0 0.0
          %777 = vmatprep.subr.mxu0 0.0
          %778 = vmatpush1.msra.mxu0 0.0
          %779 = vmatprep.subr.mxu0 0.0
          %780 = vmatpush1.msra.mxu0 0.0
          %781 = vmatprep.subr.mxu0 0.0
          %782 = vmatpush1.msra.mxu0 0.0
          %783 = vmatprep.subr.mxu0 0.0
          %784 = vmatpush1.msra.mxu0 0.0
          %785 = vmatprep.subr.mxu0 0.0
          %786 = vmatpush1.msra.mxu0 0.0
          %787 = vmatprep.mubr.f32.mxu0 0.0
          %v788 = vand.u32 %v320, 4294901760
          %v789 = vsub.f32 %v320, %v788
          %v790 = vand.u32 %v789, 4294901760
          %791 = vmatmul.mubr.f32.gmra.mrb[0].mxu0 %v790
          %v792 = vpop.f32.mrb[0].mxu0
          %v793 = vadd.f32 %v697, %v792
          %v794 = vpop.f32.mrb[0].mxu0
          %795 = vmatprep.mubr.f32.mxu0 0.0
          %v796 = vand.u32 %v321, 4294901760
          %v797 = vsub.f32 %v321, %v796
          %v798 = vand.u32 %v797, 4294901760
          %799 = vmatmul.mubr.f32.gmra.mrb[0].mxu0 %v798
          %v800 = vpop.f32.mrb[0].mxu0
          %v801 = vadd.f32 %v704, %v800
          %v802 = vpop.f32.mrb[0].mxu0
          %803 = vdwg.mxu0
          %804 = vmatprep.subr.mxu0 0.0
          %v805 = vand.u32 %v322, 4294901760
          %v806 = vsub.f32 %v322, %v805
          %v807 = vand.u32 %v806, 4294901760
          %808 = vmatpush1.msra.mxu0 %v807
          %809 = vmatprep.subr.mxu0 0.0
          %v810 = vand.u32 %v323, 4294901760
          %v811 = vsub.f32 %v323, %v810
          %v812 = vand.u32 %v811, 4294901760
          %813 = vmatpush1.msra.mxu0 %v812
          %814 = vmatprep.subr.mxu0 0.0
          %v815 = vand.u32 %v324, 4294901760
          %v816 = vsub.f32 %v324, %v815
          %v817 = vand.u32 %v816, 4294901760
          %818 = vmatpush1.msra.mxu0 %v817
          %819 = vmatprep.subr.mxu0 0.0
          %v820 = vand.u32 %v325, 4294901760
          %v821 = vsub.f32 %v325, %v820
          %v822 = vand.u32 %v821, 4294901760
          %823 = vmatpush1.msra.mxu0 %v822
          %824 = vmatprep.subr.mxu0 0.0
          %v825 = vand.u32 %v326, 4294901760
          %v826 = vsub.f32 %v326, %v825
          %v827 = vand.u32 %v826, 4294901760
          %828 = vmatpush1.msra.mxu0 %v827
          %829 = vmatprep.subr.mxu0 0.0
          %v830 = vand.u32 %v327, 4294901760
          %v831 = vsub.f32 %v327, %v830
          %v832 = vand.u32 %v831, 4294901760
          %833 = vmatpush1.msra.mxu0 %v832
          %834 = vmatprep.subr.mxu0 0.0
          %v835 = vand.u32 %v328, 4294901760
          %v836 = vsub.f32 %v328, %v835
          %v837 = vand.u32 %v836, 4294901760
          %838 = vmatpush1.msra.mxu0 %v837
          %839 = vmatprep.subr.mxu0 0.0
          %v840 = vand.u32 %v329, 4294901760
          %v841 = vsub.f32 %v329, %v840
          %v842 = vand.u32 %v841, 4294901760
          %843 = vmatpush1.msra.mxu0 %v842
          %844 = vmatprep.subr.mxu0 0.0
          %v845 = vand.u32 %v330, 4294901760
          %v846 = vsub.f32 %v330, %v845
          %v847 = vand.u32 %v846, 4294901760
          %848 = vmatpush1.msra.mxu0 %v847
          %849 = vmatprep.subr.mxu0 0.0
          %v850 = vand.u32 %v331, 4294901760
          %v851 = vsub.f32 %v331, %v850
          %v852 = vand.u32 %v851, 4294901760
          %853 = vmatpush1.msra.mxu0 %v852
          %854 = vmatprep.subr.mxu0 0.0
          %v855 = vand.u32 %v332, 4294901760
          %v856 = vsub.f32 %v332, %v855
          %v857 = vand.u32 %v856, 4294901760
          %858 = vmatpush1.msra.mxu0 %v857
          %859 = vmatprep.subr.mxu0 0.0
          %v860 = vand.u32 %v333, 4294901760
          %v861 = vsub.f32 %v333, %v860
          %v862 = vand.u32 %v861, 4294901760
          %863 = vmatpush1.msra.mxu0 %v862
          %864 = vmatprep.subr.mxu0 0.0
          %v865 = vand.u32 %v334, 4294901760
          %v866 = vsub.f32 %v334, %v865
          %v867 = vand.u32 %v866, 4294901760
          %868 = vmatpush1.msra.mxu0 %v867
          %869 = vmatprep.subr.mxu0 0.0
          %v870 = vand.u32 %v335, 4294901760
          %v871 = vsub.f32 %v335, %v870
          %v872 = vand.u32 %v871, 4294901760
          %873 = vmatpush1.msra.mxu0 %v872
          %874 = vmatprep.subr.mxu0 0.0
          %v875 = vand.u32 %v336, 4294901760
          %v876 = vsub.f32 %v336, %v875
          %v877 = vand.u32 %v876, 4294901760
          %878 = vmatpush1.msra.mxu0 %v877
          %879 = vmatprep.subr.mxu0 0.0
          %v880 = vand.u32 %v337, 4294901760
          %v881 = vsub.f32 %v337, %v880
          %v882 = vand.u32 %v881, 4294901760
          %883 = vmatpush1.msra.mxu0 %v882
          %884 = vmatprep.subr.mxu0 0.0
          %885 = vmatpush1.msra.mxu0 0.0
          %886 = vmatprep.subr.mxu0 0.0
          %887 = vmatpush1.msra.mxu0 0.0
          %888 = vmatprep.subr.mxu0 0.0
          %889 = vmatpush1.msra.mxu0 0.0
          %890 = vmatprep.subr.mxu0 0.0
          %891 = vmatpush1.msra.mxu0 0.0
          %892 = vmatprep.subr.mxu0 0.0
          %893 = vmatpush1.msra.mxu0 0.0
          %894 = vmatprep.subr.mxu0 0.0
          %895 = vmatpush1.msra.mxu0 0.0
          %896 = vmatprep.subr.mxu0 0.0
          %897 = vmatpush1.msra.mxu0 0.0
          %898 = vmatprep.subr.mxu0 0.0
          %899 = vmatpush1.msra.mxu0 0.0
          %900 = vmatprep.subr.mxu0 0.0
          %901 = vmatpush1.msra.mxu0 0.0
          %902 = vmatprep.subr.mxu0 0.0
          %903 = vmatpush1.msra.mxu0 0.0
          %904 = vmatprep.subr.mxu0 0.0
          %905 = vmatpush1.msra.mxu0 0.0
          %906 = vmatprep.subr.mxu0 0.0
          %907 = vmatpush1.msra.mxu0 0.0
          %908 = vmatprep.subr.mxu0 0.0
          %909 = vmatpush1.msra.mxu0 0.0
          %910 = vmatprep.subr.mxu0 0.0
          %911 = vmatpush1.msra.mxu0 0.0
          %912 = vmatprep.subr.mxu0 0.0
          %913 = vmatpush1.msra.mxu0 0.0
          %914 = vmatprep.subr.mxu0 0.0
          %915 = vmatpush1.msra.mxu0 0.0
          %916 = vmatprep.mubr.f32.mxu0 0.0
          %v917 = vand.u32 %v320, 4294901760
          %918 = vmatmul.mubr.f32.gmra.mrb[0].mxu0 %v917
          %v919 = vpop.f32.mrb[0].mxu0
          %v920 = vadd.f32 %v793, %v919
          %v921 = vpop.f32.mrb[0].mxu0
          %922 = vmatprep.mubr.f32.mxu0 0.0
          %v923 = vand.u32 %v321, 4294901760
          %924 = vmatmul.mubr.f32.gmra.mrb[0].mxu0 %v923
          %v925 = vpop.f32.mrb[0].mxu0
          %v926 = vadd.f32 %v801, %v925
          %v927 = vpop.f32.mrb[0].mxu0
          %928 = vdwg.mxu0
          %929 = vmatprep.subr.mxu0 0.0
          %v930 = vand.u32 %v322, 4294901760
          %931 = vmatpush1.msra.mxu0 %v930
          %932 = vmatprep.subr.mxu0 0.0
          %v933 = vand.u32 %v323, 4294901760
          %934 = vmatpush1.msra.mxu0 %v933
          %935 = vmatprep.subr.mxu0 0.0
          %v936 = vand.u32 %v324, 4294901760
          %937 = vmatpush1.msra.mxu0 %v936
          %938 = vmatprep.subr.mxu0 0.0
          %v939 = vand.u32 %v325, 4294901760
          %940 = vmatpush1.msra.mxu0 %v939
          %941 = vmatprep.subr.mxu0 0.0
          %v942 = vand.u32 %v326, 4294901760
          %943 = vmatpush1.msra.mxu0 %v942
          %944 = vmatprep.subr.mxu0 0.0
          %v945 = vand.u32 %v327, 4294901760
          %946 = vmatpush1.msra.mxu0 %v945
          %947 = vmatprep.subr.mxu0 0.0
          %v948 = vand.u32 %v328, 4294901760
          %949 = vmatpush1.msra.mxu0 %v948
          %950 = vmatprep.subr.mxu0 0.0
          %v951 = vand.u32 %v329, 4294901760
          %952 = vmatpush1.msra.mxu0 %v951
          %953 = vmatprep.subr.mxu0 0.0
          %v954 = vand.u32 %v330, 4294901760
          %955 = vmatpush1.msra.mxu0 %v954
          %956 = vmatprep.subr.mxu0 0.0
          %v957 = vand.u32 %v331, 4294901760
          %958 = vmatpush1.msra.mxu0 %v957
          %959 = vmatprep.subr.mxu0 0.0
          %v960 = vand.u32 %v332, 4294901760
          %961 = vmatpush1.msra.mxu0 %v960
          %962 = vmatprep.subr.mxu0 0.0
          %v963 = vand.u32 %v333, 4294901760
          %964 = vmatpush1.msra.mxu0 %v963
          %965 = vmatprep.subr.mxu0 0.0
          %v966 = vand.u32 %v334, 4294901760
          %967 = vmatpush1.msra.mxu0 %v966
          %968 = vmatprep.subr.mxu0 0.0
          %v969 = vand.u32 %v335, 4294901760
          %970 = vmatpush1.msra.mxu0 %v969
          %971 = vmatprep.subr.mxu0 0.0
          %v972 = vand.u32 %v336, 4294901760
          %973 = vmatpush1.msra.mxu0 %v972
          %974 = vmatprep.subr.mxu0 0.0
          %v975 = vand.u32 %v337, 4294901760
          %976 = vmatpush1.msra.mxu0 %v975
          %977 = vmatprep.subr.mxu0 0.0
          %978 = vmatpush1.msra.mxu0 0.0
          %979 = vmatprep.subr.mxu0 0.0
          %980 = vmatpush1.msra.mxu0 0.0
          %981 = vmatprep.subr.mxu0 0.0
          %982 = vmatpush1.msra.mxu0 0.0
          %983 = vmatprep.subr.mxu0 0.0
          %984 = vmatpush1.msra.mxu0 0.0
          %985 = vmatprep.subr.mxu0 0.0
          %986 = vmatpush1.msra.mxu0 0.0
          %987 = vmatprep.subr.mxu0 0.0
          %988 = vmatpush1.msra.mxu0 0.0
          %989 = vmatprep.subr.mxu0 0.0
          %990 = vmatpush1.msra.mxu0 0.0
          %991 = vmatprep.subr.mxu0 0.0
          %992 = vmatpush1.msra.mxu0 0.0
          %993 = vmatprep.subr.mxu0 0.0
          %994 = vmatpush1.msra.mxu0 0.0
          %995 = vmatprep.subr.mxu0 0.0
          %996 = vmatpush1.msra.mxu0 0.0
          %997 = vmatprep.subr.mxu0 0.0
          %998 = vmatpush1.msra.mxu0 0.0
          %999 = vmatprep.subr.mxu0 0.0
          %1000 = vmatpush1.msra.mxu0 0.0
          %1001 = vmatprep.subr.mxu0 0.0
          %1002 = vmatpush1.msra.mxu0 0.0
          %1003 = vmatprep.subr.mxu0 0.0
          %1004 = vmatpush1.msra.mxu0 0.0
          %1005 = vmatprep.subr.mxu0 0.0
          %1006 = vmatpush1.msra.mxu0 0.0
          %1007 = vmatprep.subr.mxu0 0.0
          %1008 = vmatpush1.msra.mxu0 0.0
          %1009 = vmatprep.mubr.f32.mxu0 0.0
          %v1010 = vand.u32 %v320, 4294901760
          %1011 = vmatmul.mubr.f32.gmra.mrb[0].mxu0 %v1010
          %v1012 = vpop.f32.mrb[0].mxu0
          %v1013 = vadd.f32 %v920, %v1012
          %v1014 = vpop.f32.mrb[0].mxu0
          %1015 = vmatprep.mubr.f32.mxu0 0.0
          %v1016 = vand.u32 %v321, 4294901760
          %1017 = vmatmul.mubr.f32.gmra.mrb[0].mxu0 %v1016
          %v1018 = vpop.f32.mrb[0].mxu0
          %v1019 = vadd.f32 %v926, %v1018
          %v1020 = vpop.f32.mrb[0].mxu0
          %1021 = vdwg.mxu0
          %v1022 = vld [vmem:[%s300] sm:$0xff]
          %v1023 = vld [vmem:[%s300 + $0x8] sm:$0xff]
          %v1024 = vmul.f32 %v1013, %v1022
          %v1025 = vmul.f32 %v1019, %v1023
          %v1026 = vlaneseq
          %v1027 = vshrl.u32 %v1026, 7
          %v1028 = vadd.s32 %v1027, 8
          %v1029 = vstv %s304
          %v1030 = vadd.s32 %v1029, %v1027
          %v1031 = vadd.s32 %v1029, %v1028
          %vm1032 = vcmp.lt.s32.totalorder %v1030, 16
          %vm1033 = vcmp.lt.s32.totalorder %v1031, 16
          %v1034 = vsel %vm1032, %v1024, 0.0
          %v1035 = vsel %vm1033, %v1025, 0.0
          %vm1036 = vcmask 31744
          %v1037 = vsel %vm1036, %v1034, 0.0
          %v1038 = vsel %vm1036, %v1035, 0.0
          %v1039 = vadd.f32 %v1037, %v1038
          %1040 = vadd.xlane.f32.xlu0 %v1039
          %v1041 = vpop.xlane.xlu0 %1040
          %v1042 = vrot.slane %v1041, 4
          %v1043 = vadd.f32 %v1041, %v1042
          %v1044 = vrot.slane %v1043, 2
          %v1045 = vadd.f32 %v1043, %v1044
          %v1046 = vrot.slane %v1045, 1
          %v1047 = vadd.f32 %v1045, %v1046
          %s1048 = vtos %v1047
          %v1049 = vld [vmem:[%s270] sm:$0xff]
          %v1050 = vstv %s1048
          %v1051 = vadd.f32 %v1049, %v1050
          %1052 = vst [vmem:[%s270] sm:$0xff] %v1051
        $region44: #{tpu_custom_call.1} parent=35 // pred_fallthru
          _
        %s1053 = sand.u32 %s151, 1
        %s1054 = scalar_lea.sflag [#allocation3], %s1053
        %s1055 = sand.u32 %s151, 1
        %s1056 = smul.addr %s1055, 8
        %s1057 = scalar_lea.vmem [#allocation2], %s1056
        // Predicated region
        $region45: #{tpu_custom_call.1} parent=35 // pred_check
          %p1058 = pneg %p161
        $region46: #{tpu_custom_call.1} parent=35 // pred_check_branch
          %1060 = sbr.rel (%p1058) target = $region48
        $region47: #{tpu_custom_call.1} parent=35 // pred_region
          %s1062 = ssub.s32 128, 128
          %1063 = vsyncadd %s1054, %s1062
          %s1064 = smul.addr %s22, 128
          %s1065 = scalar_lea.hbm %s4, %s1064
          %s1067 = sshll.u32 %s1057, 4
          %s1068 = int_to_ptr.vmem [resolvable:$true] %s1067
          %1070 = dma.vmem_to_hbm [thread:$0]  %s1068, 128, %s1065, %s1054
        $region48: #{tpu_custom_call.1} parent=35 // pred_fallthru
          _
      $region36: #{tpu_custom_call.1} parent=5 // pred_fallthru
        _
      %p1071 = scmp.le.s32.totalorder 2, %s13
      // Predicated region
      $region49: #{tpu_custom_call.1} parent=5 // pred_check
        %p1072 = pneg %p1071
      $region50: #{tpu_custom_call.1} parent=5 // pred_check_branch
        %1074 = sbr.rel (%p1072) target = $region52
      $region51: #{tpu_custom_call.1} parent=5 // pred_region
        %s1075 = ssub.s32 %s13, 2
        // Predicated region
        $region53: #{tpu_custom_call.1} parent=51 // pred_check
          %p1076 = pneg %p167
        $region54: #{tpu_custom_call.1} parent=51 // pred_check_branch
          %1078 = sbr.rel (%p1076) target = $region56
        $region55: #{tpu_custom_call.1} parent=51 // pred_region
          %s1079 = sand.u32 %s152, 1
          %s1080 = scalar_lea.sflag [#allocation3], %s1079
          %s1081 = sand.u32 %s152, 1
          %s1082 = smul.addr %s1081, 8
          %s1083 = scalar_lea.vmem [#allocation2], %s1082
          %1084 = dma.done %s1080, 128
        $region56: #{tpu_custom_call.1} parent=51 // pred_fallthru
          _
      $region52: #{tpu_custom_call.1} parent=5 // pred_fallthru
        _
    $region6: #{tpu_custom_call.1} parent=1 // loop_footer
      %s17 = sadd.s32 1, %s13
    $region7: #{tpu_custom_call.1} parent=1 // loop_footer_branch
      %12 = sbr.rel target = $region3
    $region8: #{tpu_custom_call.1} parent=1 // loop_exit
      _
    %1085 = vsyncpa [#allocation3], 1
    %s1086 = scalar_lea.sflag [#allocation3], 1
    %1087 = vsyncpa %s1086, 1

</llo_original>
